<compile_context>
chip_gen: v7x
topology: tpu7x:2x2x1
jax: 0.10.0
libtpu: 0.0.40
codegen_flags: <defaults>
</compile_context>

<pallas_src>
import jax
import jax.numpy as jnp
from jax.experimental import pallas as pl
from jax.experimental.pallas import tpu as pltpu

# ----- model constants (ECC_dynamics.__init__) --------------------------------
ALPHA = 216.0
N_HILL = 2.0                # statically 2 -> squared terms use a plain multiply
K = 20.0
DELTA_BETA = 0.1            # deterministic synthetic init
BETA = 1.0 + DELTA_BETA
ETA = 2.0
KS0 = 1.0
KS1 = 0.01
Q = 0.8                     # deterministic synthetic init
# TODO(synk): phase_forward / phase_forward1 depend on an arbitrary callable
#             Gamma and an external `model`; not part of forward(), not ported.

_TARGET_BLOCK_BYTES = 2 << 20        # ~2 MiB blocks: HBM roofline sweet spot, v7x-safe
_MIN_BLOCK_BYTES = 512 << 10         # don't shrink blocks below this chasing step count
_MIN_GRID_BLOCKS = 8                 # aim for >=4 pipeline steps per TC when big enough
_MAX_WHOLE_N_BLOCK_BYTES = 4 << 20   # beyond this (at TB=8), tile N instead


def _ceil_div(a, b):
    return -(-a // b)


def _round_up(a, m):
    return _ceil_div(a, m) * m


def _pick_batch_tile(batch, n, itemsize, align):
    """Batch tile: balanced, even block count, blocks near the byte sweet spot.

    `align` is 8 when batch sits on sublanes (layout (7, TB, N)) and 128 when
    batch sits on lanes (layout (7, N, TB)).
    """
    row_bytes = 7 * n * itemsize          # bytes per batch element, all species
    total = batch * row_bytes
    # number of grid steps: ~2 MiB blocks, but at least enough steps for
    # pipelining/megacore (never shrinking blocks below ~512 KiB for it)
    nblk = max(1, total // _TARGET_BLOCK_BYTES)
    nblk = max(nblk, min(_MIN_GRID_BLOCKS, max(1, total // _MIN_BLOCK_BYTES)))
    nblk = min(nblk, _ceil_div(batch, align))
    if nblk > 1 and nblk % 2:
        nblk += 1                          # even block count -> 2-TC balance on v7x
    tb = _ceil_div(batch, nblk)
    tb = _round_up(tb, align)              # rounding UP keeps blocks ~equal
    return min(tb, batch)


def _padded_block_bytes(shape, itemsize):
    """Approximate VMEM footprint of one block ((8,128) tile padding)."""
    lead = 1
    for d in shape[:-2]:
        lead *= d
    r, c = shape[-2], shape[-1]
    return lead * _round_up(max(r, 1), 8) * _round_up(max(c, 1), 128) * itemsize


def _compiler_params(dim_sem, vmem_need_bytes):
    # Explicit scoped-VMEM request (v5e default is only 16 MiB); stay well
    # under v7x's 64 MiB physical VMEM.
    limit = int(min(64 << 20, max(16 << 20, vmem_need_bytes + (4 << 20))))
    return pltpu.CompilerParams(dimension_semantics=dim_sem,
                                vmem_limit_bytes=limit)


def _cost(bsz, n, itemsize, extra_bytes=0):
    # Advisory only: streaming kernel, ~35 flops / element, no transcendentals.
    return pl.CostEstimate(flops=int(35 * bsz * n),
                           transcendentals=0,
                           bytes_accessed=int(2 * 7 * bsz * n * itemsize
                                              + extra_bytes))


# ----------------------------- kernel bodies ----------------------------------
def _make_whole_n_kernel(mean_axis_2d):
    """Kernel for blocks where the oscillator axis N is whole inside the block.

    Each species slice x_ref[k] is a 2-D tile; `mean_axis_2d` is the axis of N
    inside that slice (1 for layout (7, TB, N), 0 for layout (7, N, TB)), so
    the per-batch-row S mean is exact per block.
    Species are loaded/stored in an order keeping <=3 slabs live at once.
    """
    def kernel(x_ref, o_ref):
        a = x_ref[0]
        C = x_ref[5]
        o_ref[0] = ALPHA / (1.0 + C * C) - a                      # da
        c = x_ref[2]
        o_ref[5] = BETA * (c - C)                                 # dC
        A = x_ref[3]
        o_ref[3] = BETA * (a - A)                                 # dA
        b = x_ref[1]
        o_ref[1] = ALPHA / (1.0 + A * A) - b                      # db
        B_ = x_ref[4]
        o_ref[4] = BETA * (b - B_)                                # dB
        S = x_ref[6]
        o_ref[2] = ALPHA / (1.0 + B_ * B_) - c + K * S / (1.0 + S)  # dc
        s_mean = jnp.mean(S, axis=mean_axis_2d, keepdims=True)    # exact: N whole
        o_ref[6] = KS1 * A - KS0 * S - ETA * (S - Q * s_mean)     # dS
    return kernel


def _ecc_kernel_tiled_n(x_ref, smean_ref, o_ref):
    """Kernel for (7, TB, TN) blocks when N itself is tiled.

    The per-row oscillator mean of S is precomputed outside the kernel and
    passed as a tiny (TB, 1) input, so every block stays purely elementwise
    (no cross-N-tile accumulate/revisit needed).
    """
    a = x_ref[0]
    C = x_ref[5]
    o_ref[0] = ALPHA / (1.0 + C * C) - a
    c = x_ref[2]
    o_ref[5] = BETA * (c - C)
    A = x_ref[3]
    o_ref[3] = BETA * (a - A)
    b = x_ref[1]
    o_ref[1] = ALPHA / (1.0 + A * A) - b
    B_ = x_ref[4]
    o_ref[4] = BETA * (b - B_)
    S = x_ref[6]
    o_ref[2] = ALPHA / (1.0 + B_ * B_) - c + K * S / (1.0 + S)
    s_mean = smean_ref[...]                                       # (TB, 1), broadcasts
    o_ref[6] = KS1 * A - KS0 * S - ETA * (S - Q * s_mean)


# ----------------------------- pallas wrappers --------------------------------
def _ecc_rhs_tiled_n(x):
    """Large-N path on a (7, B, N) slab: tile both batch and N."""
    _, bsz, n = x.shape
    itemsize = x.dtype.itemsize
    # Oscillator mean of S hoisted out of the kernel: one extra HBM read of
    # the S species only (1/14 of total traffic), keeps all blocks independent.
    s_mean = jnp.mean(x[6], axis=-1, keepdims=True)               # (B, 1)

    tb = bsz if bsz < 8 else 8
    tn = max(128, (_TARGET_BLOCK_BYTES // (7 * tb * itemsize)) // 128 * 128)
    tn = min(tn, _round_up(n, 128))

    x_spec = pl.BlockSpec((7, tb, tn), lambda i, j: (0, i, j))
    m_spec = pl.BlockSpec((tb, 1), lambda i, j: (i, 0))

    blk_bytes = _padded_block_bytes((7, tb, tn), itemsize)
    need = 2 * 2 * blk_bytes + 2 * _padded_block_bytes((tb, 1), itemsize)

    return pl.pallas_call(
        _ecc_kernel_tiled_n,
        out_shape=jax.ShapeDtypeStruct(x.shape, x.dtype),
        grid=(_ceil_div(bsz, tb), _ceil_div(n, tn)),
        in_specs=[x_spec, m_spec],
        out_specs=x_spec,
        compiler_params=_compiler_params(("parallel", "parallel"), need),
        cost_estimate=_cost(bsz, n, itemsize, extra_bytes=bsz * itemsize),
    )(x, s_mean)


def _ecc_rhs_slab(x, batch_on_lanes=False):
    """Pallas call on a species-major slab.

    batch_on_lanes=False: x is (7, B, N)  (N on the 128-lane axis)
    batch_on_lanes=True : x is (7, N, B)  (batch on the 128-lane axis; for
                                           small oscillator counts N < 128)
    """
    assert x.shape[0] == 7, "expected species-major slab with leading dim 7"
    itemsize = x.dtype.itemsize

    if batch_on_lanes:
        n, bsz = x.shape[1], x.shape[2]
        align, mean_axis_2d = 128, 0
        tb = _pick_batch_tile(bsz, n, itemsize, align)
        blk_shape = (7, n, tb)
        index_map = lambda i: (0, 0, i)
    else:
        bsz, n = x.shape[1], x.shape[2]
        # Large-N guard: a whole-N block even at TB=8 would blow VMEM -> tile N.
        if 7 * 8 * n * itemsize > _MAX_WHOLE_N_BLOCK_BYTES:
            return _ecc_rhs_tiled_n(x)
        align, mean_axis_2d = 8, 1
        tb = _pick_batch_tile(bsz, n, itemsize, align)
        blk_shape = (7, tb, n)
        index_map = lambda i: (0, i, 0)

    spec = pl.BlockSpec(blk_shape, index_map)
    need = 2 * 2 * _padded_block_bytes(blk_shape, itemsize)   # in+out, 2 buffers

    return pl.pallas_call(
        _make_whole_n_kernel(mean_axis_2d),
        out_shape=jax.ShapeDtypeStruct(x.shape, x.dtype),
        grid=(_ceil_div(bsz, tb),),
        in_specs=[spec],
        out_specs=spec,
        compiler_params=_compiler_params(("parallel",), need),
        cost_estimate=_cost(bsz, n, itemsize),
    )(x)


@jax.jit
def ecc_dynamics_rhs(t, x):
    """Fast path: RHS on a species-major (7, B, N) slab. `t` is unused.

    Keep the ODE state in this layout across the whole integration; convert
    to/from the interleaved (B, L) layout once per trajectory.
    """
    del t
    return _ecc_rhs_slab(x, batch_on_lanes=False)


@jax.jit
def ecc_dynamics_forward(t, state):
    """Drop-in Pallas equivalent of ECC_dynamics.forward(t, state).

    state: (B, L) with L = 7*N, species interleaved with stride 7.  The layout
    conversion happens only at this boundary; for repeated integrator calls
    prefer ecc_dynamics_rhs on the species-major slab.
    """
    # TODO(synk): the stride-7 (de)interleave could be fused into the kernel
    #             itself (7-wide minor-dim shuffle in VMEM); kept as a boundary
    #             transpose here since the rhs fast path avoids it entirely.
    del t
    bsz, length = state.shape
    n = length // 7
    xv = state.reshape(bsz, n, 7)
    if n < 128 and bsz > n:
        # small oscillator count: put batch on the 128-lane axis (dense stores)
        x = xv.transpose(2, 1, 0)                       # (7, N, B)
        out = _ecc_rhs_slab(x, batch_on_lanes=True)
        return out.transpose(2, 1, 0).reshape(bsz, length)
    x = xv.transpose(2, 0, 1)                           # (7, B, N)
    out = _ecc_rhs_slab(x, batch_on_lanes=False)
    return out.transpose(1, 2, 0).reshape(bsz, length)


# ----------------------------- reference & tests ------------------------------
def _reference_forward(state):
    """Pure-JAX reference matching the PyTorch forward, for verification."""
    length = state.shape[1]
    a = state[:, 0:length:7]
    b = state[:, 1:length:7]
    c = state[:, 2:length:7]
    A = state[:, 3:length:7]
    B = state[:, 4:length:7]
    C = state[:, 5:length:7]
    S = state[:, 6:length:7]
    dstate = jnp.zeros_like(state)
    dstate = dstate.at[:, 0:length:7].set(-a + ALPHA / (1.0 + C ** N_HILL))
    dstate = dstate.at[:, 1:length:7].set(-b + ALPHA / (1.0 + A ** N_HILL))
    dstate = dstate.at[:, 2:length:7].set(
        -c + ALPHA / (1.0 + B ** N_HILL) + K * S / (1.0 + S))
    dstate = dstate.at[:, 3:length:7].set(BETA * (a - A))
    dstate = dstate.at[:, 4:length:7].set(BETA * (b - B))
    dstate = dstate.at[:, 5:length:7].set(BETA * (c - C))
    dstate = dstate.at[:, 6:length:7].set(
        -KS0 * S + KS1 * A
        - ETA * (S - Q * S.mean(axis=1).reshape(-1, 1)))
    return dstate


def _check(state, t):
    dstate = ecc_dynamics_forward(t, state)
    jax.block_until_ready(dstate)
    ref = _reference_forward(state)
    assert dstate.shape == state.shape and dstate.dtype == state.dtype
    assert jnp.allclose(dstate, ref, rtol=1e-5, atol=1e-4), "mismatch vs reference"
    return ref


if __name__ == "__main__":
    key = jax.random.PRNGKey(0)
    t = jnp.float32(0.0)

    # 1) small shape consistent with the module: batch=2, N=8 oscillators
    batch, n_osc = 2, 8
    L = 7 * n_osc
    state = jax.random.uniform(key, (batch, L), dtype=jnp.float32,
                               minval=0.1, maxval=5.0)
    ref = _check(state, t)

    # also exercise the species-major fast path on the same problem
    x_slab = jnp.transpose(state.reshape(batch, n_osc, 7), (2, 0, 1))
    d_slab = ecc_dynamics_rhs(t, x_slab)
    jax.block_until_ready(d_slab)
    d_from_slab = jnp.transpose(d_slab, (1, 2, 0)).reshape(batch, L)
    assert jnp.allclose(d_from_slab, ref, rtol=1e-5, atol=1e-4)

    # 2) lane-dense shape (N multiple of 128, batch multiple of 8)
    state2 = jax.random.uniform(jax.random.PRNGKey(1), (8, 7 * 128),
                                dtype=jnp.float32, minval=0.1, maxval=5.0)
    _check(state2, t)

    # 3) multi-block balanced grid (batch tiled, partial last block)
    state3 = jax.random.uniform(jax.random.PRNGKey(2), (700, 7 * 128),
                                dtype=jnp.float32, minval=0.1, maxval=5.0)
    _check(state3, t)

    # 4) small oscillator count, large batch -> batch-on-lanes layout
    state4 = jax.random.uniform(jax.random.PRNGKey(3), (300, 7 * 8),
                                dtype=jnp.float32, minval=0.1, maxval=5.0)
    _check(state4, t)

    # 5) very large oscillator count -> N-tiled path (hoisted S mean)
    state5 = jax.random.uniform(jax.random.PRNGKey(4), (16, 7 * 20000),
                                dtype=jnp.float32, minval=0.1, maxval=5.0)
    _check(state5, t)

    print("KERNEL_OK")
</pallas_src>

<mosaic_0001>
module attributes {stable_mosaic.version = 11 : i64} {
  func.func @kernel(%arg0: i32, %arg1: memref<7x2x8xf32, #tpu.memory_space<vmem>>, %arg2: memref<7x2x8xf32, #tpu.memory_space<vmem>>) attributes {dimension_semantics = [#tpu.dimension_semantics<parallel>], iteration_bounds = array<i64: 1>, scalar_prefetch = 0 : i64, scratch_operands = 0 : i64, tpu.core_type = #tpu.core_type<tc>, window_params = [{transform_indices = @transform_0, window_bounds = array<i64: 7, 2, 8>}, {transform_indices = @transform_1, window_bounds = array<i64: 7, 2, 8>}]} {
    %c0 = arith.constant 0 : index
    %c0_0 = arith.constant 0 : index
    %c0_1 = arith.constant 0 : index
    %0 = vector.load %arg1[%c0, %c0_0, %c0_1] : memref<7x2x8xf32, #tpu.memory_space<vmem>>, vector<1x2x8xf32>
    %1 = vector.shape_cast %0 : vector<1x2x8xf32> to vector<2x8xf32>
    %c5 = arith.constant 5 : index
    %c0_2 = arith.constant 0 : index
    %c0_3 = arith.constant 0 : index
    %2 = vector.load %arg1[%c5, %c0_2, %c0_3] : memref<7x2x8xf32, #tpu.memory_space<vmem>>, vector<1x2x8xf32>
    %3 = vector.shape_cast %2 : vector<1x2x8xf32> to vector<2x8xf32>
    %4 = arith.mulf %3, %3 : vector<2x8xf32>
    %cst = arith.constant 1.000000e+00 : f32
    %5 = vector.broadcast %cst : f32 to vector<2x8xf32>
    %6 = arith.addf %5, %4 : vector<2x8xf32>
    %cst_4 = arith.constant 2.160000e+02 : f32
    %7 = vector.broadcast %cst_4 : f32 to vector<2x8xf32>
    %8 = arith.divf %7, %6 : vector<2x8xf32>
    %9 = arith.subf %8, %1 : vector<2x8xf32>
    %c0_5 = arith.constant 0 : index
    %c0_6 = arith.constant 0 : index
    %c0_7 = arith.constant 0 : index
    %10 = vector.load %arg2[%c0_5, %c0_6, %c0_7] : memref<7x2x8xf32, #tpu.memory_space<vmem>>, vector<1x2x8xf32>
    %11 = vector.shape_cast %10 : vector<1x2x8xf32> to vector<2x8xf32>
    %12 = vector.shape_cast %9 : vector<2x8xf32> to vector<1x2x8xf32>
    tpu.vector_store %arg2[%c0_5, %c0_6, %c0_7], %12 {strides = array<i32>} : memref<7x2x8xf32, #tpu.memory_space<vmem>>, vector<1x2x8xf32>,
    %c2 = arith.constant 2 : index
    %c0_8 = arith.constant 0 : index
    %c0_9 = arith.constant 0 : index
    %13 = vector.load %arg1[%c2, %c0_8, %c0_9] : memref<7x2x8xf32, #tpu.memory_space<vmem>>, vector<1x2x8xf32>
    %14 = vector.shape_cast %13 : vector<1x2x8xf32> to vector<2x8xf32>
    %15 = arith.subf %14, %3 : vector<2x8xf32>
    %cst_10 = arith.constant 1.100000e+00 : f32
    %16 = vector.broadcast %cst_10 : f32 to vector<2x8xf32>
    %17 = arith.mulf %16, %15 : vector<2x8xf32>
    %c5_11 = arith.constant 5 : index
    %c0_12 = arith.constant 0 : index
    %c0_13 = arith.constant 0 : index
    %18 = vector.load %arg2[%c5_11, %c0_12, %c0_13] : memref<7x2x8xf32, #tpu.memory_space<vmem>>, vector<1x2x8xf32>
    %19 = vector.shape_cast %18 : vector<1x2x8xf32> to vector<2x8xf32>
    %20 = vector.shape_cast %17 : vector<2x8xf32> to vector<1x2x8xf32>
    tpu.vector_store %arg2[%c5_11, %c0_12, %c0_13], %20 {strides = array<i32>} : memref<7x2x8xf32, #tpu.memory_space<vmem>>, vector<1x2x8xf32>,
    %c3 = arith.constant 3 : index
    %c0_14 = arith.constant 0 : index
    %c0_15 = arith.constant 0 : index
    %21 = vector.load %arg1[%c3, %c0_14, %c0_15] : memref<7x2x8xf32, #tpu.memory_space<vmem>>, vector<1x2x8xf32>
    %22 = vector.shape_cast %21 : vector<1x2x8xf32> to vector<2x8xf32>
    %23 = arith.subf %1, %22 : vector<2x8xf32>
    %cst_16 = arith.constant 1.100000e+00 : f32
    %24 = vector.broadcast %cst_16 : f32 to vector<2x8xf32>
    %25 = arith.mulf %24, %23 : vector<2x8xf32>
    %c3_17 = arith.constant 3 : index
    %c0_18 = arith.constant 0 : index
    %c0_19 = arith.constant 0 : index
    %26 = vector.load %arg2[%c3_17, %c0_18, %c0_19] : memref<7x2x8xf32, #tpu.memory_space<vmem>>, vector<1x2x8xf32>
    %27 = vector.shape_cast %26 : vector<1x2x8xf32> to vector<2x8xf32>
    %28 = vector.shape_cast %25 : vector<2x8xf32> to vector<1x2x8xf32>
    tpu.vector_store %arg2[%c3_17, %c0_18, %c0_19], %28 {strides = array<i32>} : memref<7x2x8xf32, #tpu.memory_space<vmem>>, vector<1x2x8xf32>,
    %c1 = arith.constant 1 : index
    %c0_20 = arith.constant 0 : index
    %c0_21 = arith.constant 0 : index
    %29 = vector.load %arg1[%c1, %c0_20, %c0_21] : memref<7x2x8xf32, #tpu.memory_space<vmem>>, vector<1x2x8xf32>
    %30 = vector.shape_cast %29 : vector<1x2x8xf32> to vector<2x8xf32>
    %31 = arith.mulf %22, %22 : vector<2x8xf32>
    %cst_22 = arith.constant 1.000000e+00 : f32
    %32 = vector.broadcast %cst_22 : f32 to vector<2x8xf32>
    %33 = arith.addf %32, %31 : vector<2x8xf32>
    %cst_23 = arith.constant 2.160000e+02 : f32
    %34 = vector.broadcast %cst_23 : f32 to vector<2x8xf32>
    %35 = arith.divf %34, %33 : vector<2x8xf32>
    %36 = arith.subf %35, %30 : vector<2x8xf32>
    %c1_24 = arith.constant 1 : index
    %c0_25 = arith.constant 0 : index
    %c0_26 = arith.constant 0 : index
    %37 = vector.load %arg2[%c1_24, %c0_25, %c0_26] : memref<7x2x8xf32, #tpu.memory_space<vmem>>, vector<1x2x8xf32>
    %38 = vector.shape_cast %37 : vector<1x2x8xf32> to vector<2x8xf32>
    %39 = vector.shape_cast %36 : vector<2x8xf32> to vector<1x2x8xf32>
    tpu.vector_store %arg2[%c1_24, %c0_25, %c0_26], %39 {strides = array<i32>} : memref<7x2x8xf32, #tpu.memory_space<vmem>>, vector<1x2x8xf32>,
    %c4 = arith.constant 4 : index
    %c0_27 = arith.constant 0 : index
    %c0_28 = arith.constant 0 : index
    %40 = vector.load %arg1[%c4, %c0_27, %c0_28] : memref<7x2x8xf32, #tpu.memory_space<vmem>>, vector<1x2x8xf32>
    %41 = vector.shape_cast %40 : vector<1x2x8xf32> to vector<2x8xf32>
    %42 = arith.subf %30, %41 : vector<2x8xf32>
    %cst_29 = arith.constant 1.100000e+00 : f32
    %43 = vector.broadcast %cst_29 : f32 to vector<2x8xf32>
    %44 = arith.mulf %43, %42 : vector<2x8xf32>
    %c4_30 = arith.constant 4 : index
    %c0_31 = arith.constant 0 : index
    %c0_32 = arith.constant 0 : index
    %45 = vector.load %arg2[%c4_30, %c0_31, %c0_32] : memref<7x2x8xf32, #tpu.memory_space<vmem>>, vector<1x2x8xf32>
    %46 = vector.shape_cast %45 : vector<1x2x8xf32> to vector<2x8xf32>
    %47 = vector.shape_cast %44 : vector<2x8xf32> to vector<1x2x8xf32>
    tpu.vector_store %arg2[%c4_30, %c0_31, %c0_32], %47 {strides = array<i32>} : memref<7x2x8xf32, #tpu.memory_space<vmem>>, vector<1x2x8xf32>,
    %c6 = arith.constant 6 : index
    %c0_33 = arith.constant 0 : index
    %c0_34 = arith.constant 0 : index
    %48 = vector.load %arg1[%c6, %c0_33, %c0_34] : memref<7x2x8xf32, #tpu.memory_space<vmem>>, vector<1x2x8xf32>
    %49 = vector.shape_cast %48 : vector<1x2x8xf32> to vector<2x8xf32>
    %50 = arith.mulf %41, %41 : vector<2x8xf32>
    %cst_35 = arith.constant 1.000000e+00 : f32
    %51 = vector.broadcast %cst_35 : f32 to vector<2x8xf32>
    %52 = arith.addf %51, %50 : vector<2x8xf32>
    %cst_36 = arith.constant 2.160000e+02 : f32
    %53 = vector.broadcast %cst_36 : f32 to vector<2x8xf32>
    %54 = arith.divf %53, %52 : vector<2x8xf32>
    %55 = arith.subf %54, %14 : vector<2x8xf32>
    %cst_37 = arith.constant 2.000000e+01 : f32
    %56 = vector.broadcast %cst_37 : f32 to vector<2x8xf32>
    %57 = arith.mulf %56, %49 : vector<2x8xf32>
    %cst_38 = arith.constant 1.000000e+00 : f32
    %58 = vector.broadcast %cst_38 : f32 to vector<2x8xf32>
    %59 = arith.addf %58, %49 : vector<2x8xf32>
    %60 = arith.divf %57, %59 : vector<2x8xf32>
    %61 = arith.addf %55, %60 : vector<2x8xf32>
    %c2_39 = arith.constant 2 : index
    %c0_40 = arith.constant 0 : index
    %c0_41 = arith.constant 0 : index
    %62 = vector.load %arg2[%c2_39, %c0_40, %c0_41] : memref<7x2x8xf32, #tpu.memory_space<vmem>>, vector<1x2x8xf32>
    %63 = vector.shape_cast %62 : vector<1x2x8xf32> to vector<2x8xf32>
    %64 = vector.shape_cast %61 : vector<2x8xf32> to vector<1x2x8xf32>
    tpu.vector_store %arg2[%c2_39, %c0_40, %c0_41], %64 {strides = array<i32>} : memref<7x2x8xf32, #tpu.memory_space<vmem>>, vector<1x2x8xf32>,
    %cst_42 = arith.constant dense<0.000000e+00> : vector<2xf32>
    %65 = vector.multi_reduction <add>, %49, %cst_42 [1] : vector<2x8xf32> to vector<2xf32>
    %66 = vector.shape_cast %65 : vector<2xf32> to vector<2x1xf32>
    %cst_43 = arith.constant 8.000000e+00 : f32
    %67 = vector.broadcast %cst_43 : f32 to vector<2x1xf32>
    %68 = arith.divf %66, %67 : vector<2x1xf32>
    %cst_44 = arith.constant 0.00999999977 : f32
    %69 = vector.broadcast %cst_44 : f32 to vector<2x8xf32>
    %70 = arith.mulf %69, %22 : vector<2x8xf32>
    %cst_45 = arith.constant 1.000000e+00 : f32
    %71 = vector.broadcast %cst_45 : f32 to vector<2x8xf32>
    %72 = arith.mulf %71, %49 : vector<2x8xf32>
    %73 = arith.subf %70, %72 : vector<2x8xf32>
    %cst_46 = arith.constant 8.000000e-01 : f32
    %74 = vector.broadcast %cst_46 : f32 to vector<2x1xf32>
    %75 = arith.mulf %74, %68 : vector<2x1xf32>
    %76 = vector.broadcast %75 : vector<2x1xf32> to vector<2x8xf32>
    %77 = arith.subf %49, %76 : vector<2x8xf32>
    %cst_47 = arith.constant 2.000000e+00 : f32
    %78 = vector.broadcast %cst_47 : f32 to vector<2x8xf32>
    %79 = arith.mulf %78, %77 : vector<2x8xf32>
    %80 = arith.subf %73, %79 : vector<2x8xf32>
    %c6_48 = arith.constant 6 : index
    %c0_49 = arith.constant 0 : index
    %c0_50 = arith.constant 0 : index
    %81 = vector.load %arg2[%c6_48, %c0_49, %c0_50] : memref<7x2x8xf32, #tpu.memory_space<vmem>>, vector<1x2x8xf32>
    %82 = vector.shape_cast %81 : vector<1x2x8xf32> to vector<2x8xf32>
    %83 = vector.shape_cast %80 : vector<2x8xf32> to vector<1x2x8xf32>
    tpu.vector_store %arg2[%c6_48, %c0_49, %c0_50], %83 {strides = array<i32>} : memref<7x2x8xf32, #tpu.memory_space<vmem>>, vector<1x2x8xf32>,
    return
  }
  func.func @transform_0(%arg0: i32) -> (i32, i32, i32) {
    %c0_i32 = arith.constant 0 : i32
    %c0_i32_0 = arith.constant 0 : i32
    %c0_i32_1 = arith.constant 0 : i32
    return %c0_i32, %arg0, %c0_i32_0 : i32, i32, i32
  }
  func.func @transform_1(%arg0: i32) -> (i32, i32, i32) {
    %c0_i32 = arith.constant 0 : i32
    %c0_i32_0 = arith.constant 0 : i32
    %c0_i32_1 = arith.constant 0 : i32
    return %c0_i32, %arg0, %c0_i32_0 : i32, i32, i32
  }
}

</mosaic_0001>

<llo_original>
// kernel: ecc_dynamics_forward.1
$region0: #{ecc_dynamics_forward.1}
  #allocation0 [shape = 'u32[]', space=smem, size = 0x4, offset = 0x4, fixed_abs, tag = 'smem constant byte address 0x4 - core index']
  #allocation1 [shape = 'u32[144,128]{1,0:T(1,128)}', space=vmem, size = 0x12000, scoped, tag = 'internal scratch']
  %s0 = inlined_call_operand.vmem [shape: f32[7,2,8], index: 0, kind: input, shape index: {}]
  %s1 = inlined_call_operand.vmem [shape: f32[7,2,8], index: 1, kind: output, shape index: {}]
  %s2 = sld [smem:[#allocation0]]
  $region14: #{ecc_dynamics_forward.1} parent=0
    _
  %s4 = ssub.s32 1, %s2
  %s5 = scalar_select 0, %s4, %s2
  // Predicated region
  $region2: #{ecc_dynamics_forward.1} parent=0 // pred_check
    _
  $region3: #{ecc_dynamics_forward.1} parent=0 // pred_check_branch
    %7 = sbr.rel (0) target = $region5
  $region4: #{ecc_dynamics_forward.1} parent=0 // pred_region
    _
  $region5: #{ecc_dynamics_forward.1} parent=0 // pred_fallthru
    _
  %v8 = vld [vmem:[%s0] sm:$0x3]
  %s9 = scalar_lea.vmem %s0, 10
  %v10 = vld [vmem:[%s9] sm:$0x3]
  %v11 = vmul.f32 %v10, %v10
  %v12 = vadd.f32 %v11, 1.0
  %v13 = vrcp.pop %v12
  %v14 = vmul.f32 216.0, %v13
  %v15 = vsub.f32 %v14, %v8
  %vm16 = vcmask 58368
  %17 = vst.msk [vmem:[%s1] sm:$0x3] %vm16, %v15
  %s18 = scalar_lea.vmem %s0, 4
  %v19 = vld [vmem:[%s18] sm:$0x3]
  %v20 = vsub.f32 %v19, %v10
  %v21 = vmul.f32 %v20, 1.1
  %s22 = scalar_lea.vmem %s1, 10
  %23 = vst.msk [vmem:[%s22] sm:$0x3] %vm16, %v21
  %s24 = scalar_lea.vmem %s0, 6
  %v25 = vld [vmem:[%s24] sm:$0x3]
  %v26 = vsub.f32 %v8, %v25
  %v27 = vmul.f32 %v26, 1.1
  %s28 = scalar_lea.vmem %s1, 6
  %29 = vst.msk [vmem:[%s28] sm:$0x3] %vm16, %v27
  %s30 = scalar_lea.vmem %s0, 2
  %v31 = vld [vmem:[%s30] sm:$0x3]
  %v32 = vmul.f32 %v25, %v25
  %v33 = vadd.f32 %v32, 1.0
  %v34 = vrcp.pop %v33
  %v35 = vmul.f32 216.0, %v34
  %v36 = vsub.f32 %v35, %v31
  %s37 = scalar_lea.vmem %s1, 2
  %38 = vst.msk [vmem:[%s37] sm:$0x3] %vm16, %v36
  %s39 = scalar_lea.vmem %s0, 8
  %v40 = vld [vmem:[%s39] sm:$0x3]
  %v41 = vsub.f32 %v31, %v40
  %v42 = vmul.f32 %v41, 1.1
  %s43 = scalar_lea.vmem %s1, 8
  %44 = vst.msk [vmem:[%s43] sm:$0x3] %vm16, %v42
  %s45 = scalar_lea.vmem %s0, 12
  %v46 = vld [vmem:[%s45] sm:$0x3]
  %v47 = vmul.f32 %v40, %v40
  %v48 = vadd.f32 %v47, 1.0
  %v49 = vrcp.pop %v48
  %v50 = vmul.f32 216.0, %v49
  %v51 = vsub.f32 %v50, %v19
  %v52 = vmul.f32 %v46, 20.0
  %v53 = vadd.f32 %v46, 1.0
  %v54 = vrcp.pop %v53
  %v55 = vmul.f32 %v52, %v54
  %v56 = vadd.f32 %v51, %v55
  %s57 = scalar_lea.vmem %s1, 4
  %58 = vst.msk [vmem:[%s57] sm:$0x3] %vm16, %v56
  %v59 = vsel %vm16, %v46, 0.0
  %60 = vadd.xlane.f32.xlu0 %v59
  %v61 = vpop.xlane.xlu0 %60
  %v62 = vrcp.pop 8.0
  %v63 = vmul.f32 %v61, %v62
  %v64 = vmul.f32 %v25, 0.01
  %v65 = vsub.f32 %v64, %v46
  %v66 = vmul.f32 %v63, 0.8
  %v67 = vsub.f32 %v46, %v66
  %v68 = vmul.f32 %v67, 2.0
  %v69 = vsub.f32 %v65, %v68
  %s70 = scalar_lea.vmem %s1, 12
  %71 = vst.msk [vmem:[%s70] sm:$0x3] %vm16, %v69
  // Predicated region
  $region6: #{ecc_dynamics_forward.1} parent=0 // pred_check
    _
  $region7: #{ecc_dynamics_forward.1} parent=0 // pred_check_branch
    %73 = sbr.rel (0) target = $region9
  $region8: #{ecc_dynamics_forward.1} parent=0 // pred_region
    _
  $region9: #{ecc_dynamics_forward.1} parent=0 // pred_fallthru
    _
  // Predicated region
  $region10: #{ecc_dynamics_forward.1} parent=0 // pred_check
    _
  $region11: #{ecc_dynamics_forward.1} parent=0 // pred_check_branch
    %75 = sbr.rel (0) target = $region13
  $region12: #{ecc_dynamics_forward.1} parent=0 // pred_region
    _
  $region13: #{ecc_dynamics_forward.1} parent=0 // pred_fallthru
    _

</llo_original>
